<compile_context>
chip_gen: v5e
topology: v5e:2x2
jax: 0.10.0
libtpu: 0.0.40
codegen_flags: <defaults>
</compile_context>

<pallas_src>
import math

import jax
import jax.numpy as jnp
from jax.experimental import pallas as pl
from jax.experimental.pallas import tpu as pltpu

# ----------------------------- model config ---------------------------------
BATCH = 2
SEQ = 8
HIDDEN = 32
N_HEADS = 4
HEAD_DIM = HIDDEN // N_HEADS  # hn

_MASK_NEG = -65504.0


# ------------------------------ Pallas kernel -------------------------------
def _attn_kernel(x_ref, mask_ref, wqkv_ref, bqkv_ref, wdh_ref, bd_ref, o_ref):
    # x_ref:    (b*s, h)    all batches stacked along rows
    # mask_ref: (b, s, s)   ltor mask, 1 = attend, 0 = masked
    # wqkv_ref: (h, 3h)     QKV weight (pre-transposed); Q cols pre-scaled by 1/sqrt(hn)
    # bqkv_ref: (1, 3h)     QKV bias (Q part pre-scaled)
    # wdh_ref:  (n, hn, h)  dense weight (pre-transposed, split per head)
    # bd_ref:   (1, h)      dense bias
    # o_ref:    (b*s, h)
    bs, h = x_ref.shape
    b, s, _ = mask_ref.shape
    n_heads, hn, _ = wdh_ref.shape

    x = x_ref[...]
    # mixed_x_layer = self.query_key_value(hidden_states): one MXU pass for all batches.
    qkv = jnp.dot(x, wqkv_ref[...], preferred_element_type=jnp.float32) + bqkv_ref[...]

    # Split q/k/v and expose the batch dim (leading-dim split: free relayout,
    # minor dim untouched).  q is already scaled by 1/sqrt(hn) via the weights.
    q = qkv[:, 0 * h:1 * h].reshape(b, s, h)
    k = qkv[:, 1 * h:2 * h].reshape(b, s, h)
    v = qkv[:, 2 * h:3 * h].reshape(b, s, h)

    keep = mask_ref[...] != 0.0  # (b, s, s) bool

    # Per-head attention; each head's context is pushed straight through its
    # slice of the dense weight and accumulated, so there is no lane-axis
    # concatenate of head outputs and no separate full-width dense matmul.
    acc = jnp.zeros((bs, h), dtype=jnp.float32)
    for head in range(n_heads):  # static unroll; n=4
        lo = head * hn
        qh = q[:, :, lo:lo + hn]  # (b, s, hn)
        kh = k[:, :, lo:lo + hn]
        vh = v[:, :, lo:lo + hn]

        # attention_scores = (q / sqrt(hn)) @ k^T   (scale folded into q)
        scores = jnp.einsum("bqd,bkd->bqk", qh, kh,
                            preferred_element_type=jnp.float32)  # (b, s, s)
        # scores*mask + (-65504)*(1-mask)  ==  where(mask, scores, -65504) for 0/1 mask
        scores = jnp.where(keep, scores, _MASK_NEG)

        # softmax(dim=-1)
        m = jnp.max(scores, axis=-1, keepdims=True)
        e = jnp.exp(scores - m)
        p = e * pl.reciprocal(jnp.sum(e, axis=-1, keepdims=True), approx=True)

        # context = probs @ v
        ctx = jnp.einsum("bqk,bkd->bqd", p, vh,
                         preferred_element_type=jnp.float32)  # (b, s, hn)
        # dense(context): accumulate this head's contribution.
        acc = acc + jnp.dot(ctx.reshape(bs, hn), wdh_ref[head],
                            preferred_element_type=jnp.float32)

    out = acc + bd_ref[...]
    # TODO(synk): attention_dropout / output_dropout are identity here (eval mode);
    # hook up pltpu.prng_* if training-time dropout is needed.
    # TODO(synk): relative_encoding / mem(cache) / attention_scale>1.0 branches of
    # the PyTorch module are not implemented (defaults exercised here).
    # NOTE: if inputs/weights move to bf16 at real scale, feed bf16 operands to the
    # dots directly (keep preferred_element_type=f32); do not pre-cast to f32.
    o_ref[...] = out.astype(o_ref.dtype)


def parallel_self_attention(hidden_states, ltor_mask, w_qkv, b_qkv, w_dense, b_dense,
                            num_attention_heads=N_HEADS):
    """hidden_states: (b, s, h) f32; ltor_mask: (b, 1, s, s) f32 (1 = keep).
    w_qkv: (3h, h) PyTorch layout; b_qkv: (3h,); w_dense: (h, h); b_dense: (h,)."""
    b, s, h = hidden_states.shape
    hn = h // num_attention_heads
    scale = 1.0 / math.sqrt(hn)

    # One-time parameter re-layout (outside the kernel hot path):
    #   - transpose so the kernel does x @ W (== x @ W.T in torch)
    #   - fold 1/sqrt(hn) into the Q columns of the QKV weight and bias
    #   - split the dense weight per head for accumulated per-head projection
    wqkv_t = jnp.transpose(w_qkv)                        # (h, 3h)
    wqkv_t = wqkv_t.at[:, :h].multiply(scale)
    bqkv2 = b_qkv.at[:h].multiply(scale).reshape(1, 3 * h)
    wd_heads = jnp.transpose(w_dense).reshape(num_attention_heads, hn, h)
    bd2 = b_dense.reshape(1, h)

    x2 = hidden_states.reshape(b * s, h)                 # fold batch into rows
    mask3 = ltor_mask.reshape(b, s, s)                   # drop broadcast head dim

    vmem = lambda: pl.BlockSpec(memory_space=pltpu.MemorySpace.VMEM)
    out2 = pl.pallas_call(
        _attn_kernel,
        out_shape=jax.ShapeDtypeStruct((b * s, h), hidden_states.dtype),
        in_specs=[vmem() for _ in range(6)],
        out_specs=vmem(),
    )(x2, mask3, wqkv_t, bqkv2, wd_heads, bd2)
    return out2.reshape(b, s, h)


# ------------------------------ pure-JAX reference ---------------------------
def _reference(hidden_states, ltor_mask, w_qkv, b_qkv, w_dense, b_dense):
    b, s, h = hidden_states.shape
    qkv = hidden_states @ w_qkv.T + b_qkv  # (b, s, 3h)
    q, k, v = jnp.split(qkv, 3, axis=-1)

    def split_heads(t):  # (b, s, h) -> (b, n, s, hn)
        return t.reshape(b, s, N_HEADS, HEAD_DIM).transpose(0, 2, 1, 3)

    q, k, v = split_heads(q), split_heads(k), split_heads(v)
    scores = jnp.einsum("bnqd,bnkd->bnqk", q, k) / math.sqrt(HEAD_DIM)
    scores = scores * ltor_mask
    scores = scores + (-65504.0) * (1.0 - ltor_mask)
    probs = jax.nn.softmax(scores, axis=-1)
    ctx = jnp.einsum("bnqk,bnkd->bnqd", probs, v)
    ctx = ctx.transpose(0, 2, 1, 3).reshape(b, s, h)
    return ctx @ w_dense.T + b_dense


# ----------------------------------- main ------------------------------------
if __name__ == "__main__":
    key = jax.random.PRNGKey(0)
    k_x, k_wqkv, k_bqkv, k_wd, k_bd = jax.random.split(key, 5)

    hidden_states = jax.random.normal(k_x, (BATCH, SEQ, HIDDEN), dtype=jnp.float32)

    # Deterministic "init_method"-style params (normal, std=0.02); biases small.
    w_qkv = 0.02 * jax.random.normal(k_wqkv, (3 * HIDDEN, HIDDEN), dtype=jnp.float32)
    b_qkv = 0.01 * jax.random.normal(k_bqkv, (3 * HIDDEN,), dtype=jnp.float32)
    w_dense = 0.02 * jax.random.normal(k_wd, (HIDDEN, HIDDEN), dtype=jnp.float32)
    b_dense = 0.01 * jax.random.normal(k_bd, (HIDDEN,), dtype=jnp.float32)

    # Causal (left-to-right) mask, 1 = attend, 0 = masked; shape (b, 1, s, s).
    tril = jnp.tril(jnp.ones((SEQ, SEQ), dtype=jnp.float32))
    ltor_mask = jnp.broadcast_to(tril[None, None], (BATCH, 1, SEQ, SEQ))

    out = parallel_self_attention(hidden_states, ltor_mask, w_qkv, b_qkv, w_dense, b_dense)
    out = jax.block_until_ready(out)

    ref = _reference(hidden_states, ltor_mask, w_qkv, b_qkv, w_dense, b_dense)
    assert out.shape == (BATCH, SEQ, HIDDEN)
    assert jnp.allclose(out, ref, atol=1e-4, rtol=1e-4), "mismatch vs reference"

    print("KERNEL_OK")
</pallas_src>

<mosaic_0001>
module attributes {stable_mosaic.version = 11 : i64} {
  func.func @_attn_kernel(%arg0: memref<16x32xf32, #tpu.memory_space<vmem>>, %arg1: memref<2x8x8xf32, #tpu.memory_space<vmem>>, %arg2: memref<32x96xf32, #tpu.memory_space<vmem>>, %arg3: memref<1x96xf32, #tpu.memory_space<vmem>>, %arg4: memref<4x8x32xf32, #tpu.memory_space<vmem>>, %arg5: memref<1x32xf32, #tpu.memory_space<vmem>>, %arg6: memref<16x32xf32, #tpu.memory_space<vmem>>) attributes {dimension_semantics = [], scalar_prefetch = 0 : i64, scratch_operands = 0 : i64, tpu.core_type = #tpu.core_type<tc>} {
    %c0 = arith.constant 0 : index
    %c0_0 = arith.constant 0 : index
    %0 = vector.load %arg0[%c0, %c0_0] : memref<16x32xf32, #tpu.memory_space<vmem>>, vector<16x32xf32>
    %c0_1 = arith.constant 0 : index
    %c0_2 = arith.constant 0 : index
    %1 = vector.load %arg2[%c0_1, %c0_2] : memref<32x96xf32, #tpu.memory_space<vmem>>, vector<32x96xf32>
    %cst = arith.constant dense<0.000000e+00> : vector<16x96xf32>
    %2 = tpu.matmul %0, %1, %cst {dimension_numbers = #tpu.dot_dimension_numbers<[1], [0], [0], [1], [0, 0, 1, 1], [], []>} : vector<16x32xf32>, vector<32x96xf32>, vector<16x96xf32> -> vector<16x96xf32>
    %c0_3 = arith.constant 0 : index
    %c0_4 = arith.constant 0 : index
    %3 = vector.load %arg3[%c0_3, %c0_4] : memref<1x96xf32, #tpu.memory_space<vmem>>, vector<1x96xf32>
    %4 = vector.broadcast %3 : vector<1x96xf32> to vector<16x96xf32>
    %5 = arith.addf %2, %4 : vector<16x96xf32>
    %6 = vector.extract_strided_slice %5 {offsets = [0, 0], sizes = [16, 32], strides = [1, 1]} : vector<16x96xf32> to vector<16x32xf32>
    %7 = vector.shape_cast %6 : vector<16x32xf32> to vector<2x8x32xf32>
    %8 = vector.extract_strided_slice %5 {offsets = [0, 32], sizes = [16, 32], strides = [1, 1]} : vector<16x96xf32> to vector<16x32xf32>
    %9 = vector.shape_cast %8 : vector<16x32xf32> to vector<2x8x32xf32>
    %10 = vector.extract_strided_slice %5 {offsets = [0, 64], sizes = [16, 32], strides = [1, 1]} : vector<16x96xf32> to vector<16x32xf32>
    %11 = vector.shape_cast %10 : vector<16x32xf32> to vector<2x8x32xf32>
    %c0_5 = arith.constant 0 : index
    %c0_6 = arith.constant 0 : index
    %c0_7 = arith.constant 0 : index
    %12 = vector.load %arg1[%c0_5, %c0_6, %c0_7] : memref<2x8x8xf32, #tpu.memory_space<vmem>>, vector<2x8x8xf32>
    %cst_8 = arith.constant 0.000000e+00 : f32
    %13 = vector.broadcast %cst_8 : f32 to vector<2x8x8xf32>
    %14 = arith.cmpf one, %12, %13 : vector<2x8x8xf32>
    %cst_9 = arith.constant 0.000000e+00 : f32
    %15 = vector.broadcast %cst_9 : f32 to vector<16x32xf32>
    %16 = vector.extract_strided_slice %7 {offsets = [0, 0, 0], sizes = [2, 8, 8], strides = [1, 1, 1]} : vector<2x8x32xf32> to vector<2x8x8xf32>
    %17 = vector.extract_strided_slice %9 {offsets = [0, 0, 0], sizes = [2, 8, 8], strides = [1, 1, 1]} : vector<2x8x32xf32> to vector<2x8x8xf32>
    %18 = vector.extract_strided_slice %11 {offsets = [0, 0, 0], sizes = [2, 8, 8], strides = [1, 1, 1]} : vector<2x8x32xf32> to vector<2x8x8xf32>
    "tpu.trace_start"() <{level = 10 : i32, message = "bqd,bkd->bqk"}> : () -> ()
    %cst_10 = arith.constant dense<0.000000e+00> : vector<2x8x8xf32>
    %19 = tpu.matmul %16, %17, %cst_10 {dimension_numbers = #tpu.dot_dimension_numbers<[2], [2], [1], [1], [0, 0, 0, 1, 1, 1], [0], [0]>} : vector<2x8x8xf32>, vector<2x8x8xf32>, vector<2x8x8xf32> -> vector<2x8x8xf32>
    %cst_11 = arith.constant -6.550400e+04 : f32
    "tpu.trace_stop"() : () -> ()
    %20 = vector.broadcast %cst_11 : f32 to vector<2x8x8xf32>
    %21 = arith.select %14, %19, %20 : vector<2x8x8xi1>, vector<2x8x8xf32>
    %cst_12 = arith.constant dense<0xFF800000> : vector<2x8xf32>
    %22 = vector.multi_reduction <maximumf>, %21, %cst_12 [2] : vector<2x8x8xf32> to vector<2x8xf32>
    %23 = vector.shape_cast %22 : vector<2x8xf32> to vector<2x8x1xf32>
    %24 = vector.broadcast %23 : vector<2x8x1xf32> to vector<2x8x8xf32>
    %25 = arith.subf %21, %24 : vector<2x8x8xf32>
    %26 = math.exp %25 : vector<2x8x8xf32>
    %cst_13 = arith.constant dense<0.000000e+00> : vector<2x8xf32>
    %27 = vector.multi_reduction <add>, %26, %cst_13 [2] : vector<2x8x8xf32> to vector<2x8xf32>
    %28 = vector.shape_cast %27 : vector<2x8xf32> to vector<2x8x1xf32>
    %29 = tpu.reciprocal %28 {approx = true} : vector<2x8x1xf32> -> vector<2x8x1xf32>
    %30 = vector.broadcast %29 : vector<2x8x1xf32> to vector<2x8x8xf32>
    %31 = arith.mulf %26, %30 : vector<2x8x8xf32>
    "tpu.trace_start"() <{level = 10 : i32, message = "bqk,bkd->bqd"}> : () -> ()
    %cst_14 = arith.constant dense<0.000000e+00> : vector<2x8x8xf32>
    %32 = tpu.matmul %31, %18, %cst_14 {dimension_numbers = #tpu.dot_dimension_numbers<[2], [1], [1], [2], [0, 0, 0, 1, 1, 2], [0], [0]>} : vector<2x8x8xf32>, vector<2x8x8xf32>, vector<2x8x8xf32> -> vector<2x8x8xf32>
    "tpu.trace_stop"() : () -> ()
    %33 = vector.shape_cast %32 : vector<2x8x8xf32> to vector<16x8xf32>
    %c0_15 = arith.constant 0 : index
    %c0_16 = arith.constant 0 : index
    %c0_17 = arith.constant 0 : index
    %34 = vector.load %arg4[%c0_15, %c0_16, %c0_17] : memref<4x8x32xf32, #tpu.memory_space<vmem>>, vector<1x8x32xf32>
    %35 = vector.shape_cast %34 : vector<1x8x32xf32> to vector<8x32xf32>
    %cst_18 = arith.constant dense<0.000000e+00> : vector<16x32xf32>
    %36 = tpu.matmul %33, %35, %cst_18 {dimension_numbers = #tpu.dot_dimension_numbers<[1], [0], [0], [1], [0, 0, 1, 1], [], []>} : vector<16x8xf32>, vector<8x32xf32>, vector<16x32xf32> -> vector<16x32xf32>
    %37 = arith.addf %15, %36 : vector<16x32xf32>
    %38 = vector.extract_strided_slice %7 {offsets = [0, 0, 8], sizes = [2, 8, 8], strides = [1, 1, 1]} : vector<2x8x32xf32> to vector<2x8x8xf32>
    %39 = vector.extract_strided_slice %9 {offsets = [0, 0, 8], sizes = [2, 8, 8], strides = [1, 1, 1]} : vector<2x8x32xf32> to vector<2x8x8xf32>
    %40 = vector.extract_strided_slice %11 {offsets = [0, 0, 8], sizes = [2, 8, 8], strides = [1, 1, 1]} : vector<2x8x32xf32> to vector<2x8x8xf32>
    "tpu.trace_start"() <{level = 10 : i32, message = "bqd,bkd->bqk"}> : () -> ()
    %cst_19 = arith.constant dense<0.000000e+00> : vector<2x8x8xf32>
    %41 = tpu.matmul %38, %39, %cst_19 {dimension_numbers = #tpu.dot_dimension_numbers<[2], [2], [1], [1], [0, 0, 0, 1, 1, 1], [0], [0]>} : vector<2x8x8xf32>, vector<2x8x8xf32>, vector<2x8x8xf32> -> vector<2x8x8xf32>
    %cst_20 = arith.constant -6.550400e+04 : f32
    "tpu.trace_stop"() : () -> ()
    %42 = vector.broadcast %cst_20 : f32 to vector<2x8x8xf32>
    %43 = arith.select %14, %41, %42 : vector<2x8x8xi1>, vector<2x8x8xf32>
    %cst_21 = arith.constant dense<0xFF800000> : vector<2x8xf32>
    %44 = vector.multi_reduction <maximumf>, %43, %cst_21 [2] : vector<2x8x8xf32> to vector<2x8xf32>
    %45 = vector.shape_cast %44 : vector<2x8xf32> to vector<2x8x1xf32>
    %46 = vector.broadcast %45 : vector<2x8x1xf32> to vector<2x8x8xf32>
    %47 = arith.subf %43, %46 : vector<2x8x8xf32>
    %48 = math.exp %47 : vector<2x8x8xf32>
    %cst_22 = arith.constant dense<0.000000e+00> : vector<2x8xf32>
    %49 = vector.multi_reduction <add>, %48, %cst_22 [2] : vector<2x8x8xf32> to vector<2x8xf32>
    %50 = vector.shape_cast %49 : vector<2x8xf32> to vector<2x8x1xf32>
    %51 = tpu.reciprocal %50 {approx = true} : vector<2x8x1xf32> -> vector<2x8x1xf32>
    %52 = vector.broadcast %51 : vector<2x8x1xf32> to vector<2x8x8xf32>
    %53 = arith.mulf %48, %52 : vector<2x8x8xf32>
    "tpu.trace_start"() <{level = 10 : i32, message = "bqk,bkd->bqd"}> : () -> ()
    %cst_23 = arith.constant dense<0.000000e+00> : vector<2x8x8xf32>
    %54 = tpu.matmul %53, %40, %cst_23 {dimension_numbers = #tpu.dot_dimension_numbers<[2], [1], [1], [2], [0, 0, 0, 1, 1, 2], [0], [0]>} : vector<2x8x8xf32>, vector<2x8x8xf32>, vector<2x8x8xf32> -> vector<2x8x8xf32>
    "tpu.trace_stop"() : () -> ()
    %55 = vector.shape_cast %54 : vector<2x8x8xf32> to vector<16x8xf32>
    %c1 = arith.constant 1 : index
    %c0_24 = arith.constant 0 : index
    %c0_25 = arith.constant 0 : index
    %56 = vector.load %arg4[%c1, %c0_24, %c0_25] : memref<4x8x32xf32, #tpu.memory_space<vmem>>, vector<1x8x32xf32>
    %57 = vector.shape_cast %56 : vector<1x8x32xf32> to vector<8x32xf32>
    %cst_26 = arith.constant dense<0.000000e+00> : vector<16x32xf32>
    %58 = tpu.matmul %55, %57, %cst_26 {dimension_numbers = #tpu.dot_dimension_numbers<[1], [0], [0], [1], [0, 0, 1, 1], [], []>} : vector<16x8xf32>, vector<8x32xf32>, vector<16x32xf32> -> vector<16x32xf32>
    %59 = arith.addf %37, %58 : vector<16x32xf32>
    %60 = vector.extract_strided_slice %7 {offsets = [0, 0, 16], sizes = [2, 8, 8], strides = [1, 1, 1]} : vector<2x8x32xf32> to vector<2x8x8xf32>
    %61 = vector.extract_strided_slice %9 {offsets = [0, 0, 16], sizes = [2, 8, 8], strides = [1, 1, 1]} : vector<2x8x32xf32> to vector<2x8x8xf32>
    %62 = vector.extract_strided_slice %11 {offsets = [0, 0, 16], sizes = [2, 8, 8], strides = [1, 1, 1]} : vector<2x8x32xf32> to vector<2x8x8xf32>
    "tpu.trace_start"() <{level = 10 : i32, message = "bqd,bkd->bqk"}> : () -> ()
    %cst_27 = arith.constant dense<0.000000e+00> : vector<2x8x8xf32>
    %63 = tpu.matmul %60, %61, %cst_27 {dimension_numbers = #tpu.dot_dimension_numbers<[2], [2], [1], [1], [0, 0, 0, 1, 1, 1], [0], [0]>} : vector<2x8x8xf32>, vector<2x8x8xf32>, vector<2x8x8xf32> -> vector<2x8x8xf32>
    %cst_28 = arith.constant -6.550400e+04 : f32
    "tpu.trace_stop"() : () -> ()
    %64 = vector.broadcast %cst_28 : f32 to vector<2x8x8xf32>
    %65 = arith.select %14, %63, %64 : vector<2x8x8xi1>, vector<2x8x8xf32>
    %cst_29 = arith.constant dense<0xFF800000> : vector<2x8xf32>
    %66 = vector.multi_reduction <maximumf>, %65, %cst_29 [2] : vector<2x8x8xf32> to vector<2x8xf32>
    %67 = vector.shape_cast %66 : vector<2x8xf32> to vector<2x8x1xf32>
    %68 = vector.broadcast %67 : vector<2x8x1xf32> to vector<2x8x8xf32>
    %69 = arith.subf %65, %68 : vector<2x8x8xf32>
    %70 = math.exp %69 : vector<2x8x8xf32>
    %cst_30 = arith.constant dense<0.000000e+00> : vector<2x8xf32>
    %71 = vector.multi_reduction <add>, %70, %cst_30 [2] : vector<2x8x8xf32> to vector<2x8xf32>
    %72 = vector.shape_cast %71 : vector<2x8xf32> to vector<2x8x1xf32>
    %73 = tpu.reciprocal %72 {approx = true} : vector<2x8x1xf32> -> vector<2x8x1xf32>
    %74 = vector.broadcast %73 : vector<2x8x1xf32> to vector<2x8x8xf32>
    %75 = arith.mulf %70, %74 : vector<2x8x8xf32>
    "tpu.trace_start"() <{level = 10 : i32, message = "bqk,bkd->bqd"}> : () -> ()
    %cst_31 = arith.constant dense<0.000000e+00> : vector<2x8x8xf32>
    %76 = tpu.matmul %75, %62, %cst_31 {dimension_numbers = #tpu.dot_dimension_numbers<[2], [1], [1], [2], [0, 0, 0, 1, 1, 2], [0], [0]>} : vector<2x8x8xf32>, vector<2x8x8xf32>, vector<2x8x8xf32> -> vector<2x8x8xf32>
    "tpu.trace_stop"() : () -> ()
    %77 = vector.shape_cast %76 : vector<2x8x8xf32> to vector<16x8xf32>
    %c2 = arith.constant 2 : index
    %c0_32 = arith.constant 0 : index
    %c0_33 = arith.constant 0 : index
    %78 = vector.load %arg4[%c2, %c0_32, %c0_33] : memref<4x8x32xf32, #tpu.memory_space<vmem>>, vector<1x8x32xf32>
    %79 = vector.shape_cast %78 : vector<1x8x32xf32> to vector<8x32xf32>
    %cst_34 = arith.constant dense<0.000000e+00> : vector<16x32xf32>
    %80 = tpu.matmul %77, %79, %cst_34 {dimension_numbers = #tpu.dot_dimension_numbers<[1], [0], [0], [1], [0, 0, 1, 1], [], []>} : vector<16x8xf32>, vector<8x32xf32>, vector<16x32xf32> -> vector<16x32xf32>
    %81 = arith.addf %59, %80 : vector<16x32xf32>
    %82 = vector.extract_strided_slice %7 {offsets = [0, 0, 24], sizes = [2, 8, 8], strides = [1, 1, 1]} : vector<2x8x32xf32> to vector<2x8x8xf32>
    %83 = vector.extract_strided_slice %9 {offsets = [0, 0, 24], sizes = [2, 8, 8], strides = [1, 1, 1]} : vector<2x8x32xf32> to vector<2x8x8xf32>
    %84 = vector.extract_strided_slice %11 {offsets = [0, 0, 24], sizes = [2, 8, 8], strides = [1, 1, 1]} : vector<2x8x32xf32> to vector<2x8x8xf32>
    "tpu.trace_start"() <{level = 10 : i32, message = "bqd,bkd->bqk"}> : () -> ()
    %cst_35 = arith.constant dense<0.000000e+00> : vector<2x8x8xf32>
    %85 = tpu.matmul %82, %83, %cst_35 {dimension_numbers = #tpu.dot_dimension_numbers<[2], [2], [1], [1], [0, 0, 0, 1, 1, 1], [0], [0]>} : vector<2x8x8xf32>, vector<2x8x8xf32>, vector<2x8x8xf32> -> vector<2x8x8xf32>
    %cst_36 = arith.constant -6.550400e+04 : f32
    "tpu.trace_stop"() : () -> ()
    %86 = vector.broadcast %cst_36 : f32 to vector<2x8x8xf32>
    %87 = arith.select %14, %85, %86 : vector<2x8x8xi1>, vector<2x8x8xf32>
    %cst_37 = arith.constant dense<0xFF800000> : vector<2x8xf32>
    %88 = vector.multi_reduction <maximumf>, %87, %cst_37 [2] : vector<2x8x8xf32> to vector<2x8xf32>
    %89 = vector.shape_cast %88 : vector<2x8xf32> to vector<2x8x1xf32>
    %90 = vector.broadcast %89 : vector<2x8x1xf32> to vector<2x8x8xf32>
    %91 = arith.subf %87, %90 : vector<2x8x8xf32>
    %92 = math.exp %91 : vector<2x8x8xf32>
    %cst_38 = arith.constant dense<0.000000e+00> : vector<2x8xf32>
    %93 = vector.multi_reduction <add>, %92, %cst_38 [2] : vector<2x8x8xf32> to vector<2x8xf32>
    %94 = vector.shape_cast %93 : vector<2x8xf32> to vector<2x8x1xf32>
    %95 = tpu.reciprocal %94 {approx = true} : vector<2x8x1xf32> -> vector<2x8x1xf32>
    %96 = vector.broadcast %95 : vector<2x8x1xf32> to vector<2x8x8xf32>
    %97 = arith.mulf %92, %96 : vector<2x8x8xf32>
    "tpu.trace_start"() <{level = 10 : i32, message = "bqk,bkd->bqd"}> : () -> ()
    %cst_39 = arith.constant dense<0.000000e+00> : vector<2x8x8xf32>
    %98 = tpu.matmul %97, %84, %cst_39 {dimension_numbers = #tpu.dot_dimension_numbers<[2], [1], [1], [2], [0, 0, 0, 1, 1, 2], [0], [0]>} : vector<2x8x8xf32>, vector<2x8x8xf32>, vector<2x8x8xf32> -> vector<2x8x8xf32>
    "tpu.trace_stop"() : () -> ()
    %99 = vector.shape_cast %98 : vector<2x8x8xf32> to vector<16x8xf32>
    %c3 = arith.constant 3 : index
    %c0_40 = arith.constant 0 : index
    %c0_41 = arith.constant 0 : index
    %100 = vector.load %arg4[%c3, %c0_40, %c0_41] : memref<4x8x32xf32, #tpu.memory_space<vmem>>, vector<1x8x32xf32>
    %101 = vector.shape_cast %100 : vector<1x8x32xf32> to vector<8x32xf32>
    %cst_42 = arith.constant dense<0.000000e+00> : vector<16x32xf32>
    %102 = tpu.matmul %99, %101, %cst_42 {dimension_numbers = #tpu.dot_dimension_numbers<[1], [0], [0], [1], [0, 0, 1, 1], [], []>} : vector<16x8xf32>, vector<8x32xf32>, vector<16x32xf32> -> vector<16x32xf32>
    %103 = arith.addf %81, %102 : vector<16x32xf32>
    %c0_43 = arith.constant 0 : index
    %c0_44 = arith.constant 0 : index
    %104 = vector.load %arg5[%c0_43, %c0_44] : memref<1x32xf32, #tpu.memory_space<vmem>>, vector<1x32xf32>
    %105 = vector.broadcast %104 : vector<1x32xf32> to vector<16x32xf32>
    %106 = arith.addf %103, %105 : vector<16x32xf32>
    %c0_45 = arith.constant 0 : index
    %c0_46 = arith.constant 0 : index
    %107 = vector.load %arg6[%c0_45, %c0_46] : memref<16x32xf32, #tpu.memory_space<vmem>>, vector<16x32xf32>
    tpu.vector_store %arg6[%c0_45, %c0_46], %106 {strides = array<i32>} : memref<16x32xf32, #tpu.memory_space<vmem>>, vector<16x32xf32>,
    return
  }
}

</mosaic_0001>

<llo_original>
// kernel: tpu_custom_call.1
$region0: #{tpu_custom_call.1}
  #allocation0 [shape = 'u32[]', space=smem, size = 0x4, offset = 0x4, fixed_abs, tag = 'smem constant byte address 0x4 - core index']
  #allocation1 [shape = 'u32[72,128]{1,0:T(1,128)}', space=vmem, size = 0x9000, scoped, tag = 'internal scratch']
  %s0 = inlined_call_operand.hbm [shape: f32[16,32], index: 0, kind: input, shape index: {}]
  %s1 = inlined_call_operand.hbm [shape: f32[2,8,8], index: 1, kind: input, shape index: {}]
  %s2 = inlined_call_operand.hbm [shape: f32[32,96], index: 2, kind: input, shape index: {}]
  %s3 = inlined_call_operand.vmem [shape: f32[1,96], index: 3, kind: input, shape index: {}]
  %s4 = inlined_call_operand.hbm [shape: f32[4,8,32], index: 4, kind: input, shape index: {}]
  %s5 = inlined_call_operand.vmem [shape: f32[1,32], index: 5, kind: input, shape index: {}]
  %s6 = inlined_call_operand.hbm [shape: f32[16,32], index: 6, kind: output, shape index: {}]
  %s7 = sld [smem:[#allocation0]]
  $region50: #{tpu_custom_call.1} parent=0
    _
  %s9 = ssub.s32 1, %s7
  %s10 = scalar_select 0, %s9, %s7
  $region1: #{tpu_custom_call.1} parent=0
    #allocation2 [shape = 'u8[8192]{0}', space=vmem, size = 0x2000, scoped, tag = 'input window, operand 0, single buffered']
    #allocation3 [shape = 's32[1]{0}', space=sflag, size = 0x4, scoped, tag = 'scoped memory for tpu_custom_call.1']
    #allocation4 [shape = 's32[1]{0}', space=sflag, size = 0x4, scoped, tag = 'scoped memory for tpu_custom_call.1']
    #allocation5 [shape = 'u8[8192]{0}', space=vmem, size = 0x2000, scoped, tag = 'input window, operand 1, single buffered']
    #allocation6 [shape = 's32[1]{0}', space=sflag, size = 0x4, scoped, tag = 'scoped memory for tpu_custom_call.1']
    #allocation7 [shape = 'u8[16384]{0}', space=vmem, size = 0x4000, scoped, tag = 'input window, operand 2, single buffered']
    #allocation8 [shape = 'u8[16384]{0}', space=vmem, size = 0x4000, scoped, tag = 'input window, operand 4, single buffered']
    #allocation9 [shape = 's32[1]{0}', space=sflag, size = 0x4, scoped, tag = 'scoped memory for tpu_custom_call.1']
    #allocation10 [shape = 'u8[8192]{0}', space=vmem, size = 0x2000, scoped, tag = 'output window, operand 0, single buffered']
    %11 = vsyncpa [#allocation3], 0
    %12 = vsyncpa [#allocation6], 0
    %13 = vsyncpa [#allocation9], 0
    %14 = vsyncpa [#allocation4], 0
    // Predicated region
    $region2: #{tpu_custom_call.1} parent=1 // pred_check
      _
    $region3: #{tpu_custom_call.1} parent=1 // pred_check_branch
      %16 = sbr.rel (0) target = $region5
    $region4: #{tpu_custom_call.1} parent=1 // pred_region
      %18 = vsyncadd [#allocation3], 0
      %s19 = sshll.u32 %s0, 4
      %s20 = int_to_ptr.hbm [resolvable:$true] %s19
      %s21 = sshll.u32 [#allocation2], 4
      %s22 = int_to_ptr.vmem [resolvable:$true] %s21
      %27 = dma.hbm_to_vmem [thread:$0]  %s20, 256, %s22, [#allocation3], 128, 128, 8
    $region5: #{tpu_custom_call.1} parent=1 // pred_fallthru
      _
    // Predicated region
    $region6: #{tpu_custom_call.1} parent=1 // pred_check
      _
    $region7: #{tpu_custom_call.1} parent=1 // pred_check_branch
      %29 = sbr.rel (0) target = $region9
    $region8: #{tpu_custom_call.1} parent=1 // pred_region
      %31 = vsyncadd [#allocation6], 0
      %s32 = sshll.u32 %s1, 4
      %s33 = int_to_ptr.hbm [resolvable:$true] %s32
      %s34 = sshll.u32 [#allocation5], 4
      %s35 = int_to_ptr.vmem [resolvable:$true] %s34
      %40 = dma.hbm_to_vmem [thread:$0]  %s33, 256, %s35, [#allocation6], 128, 128, 8
    $region9: #{tpu_custom_call.1} parent=1 // pred_fallthru
      _
    // Predicated region
    $region10: #{tpu_custom_call.1} parent=1 // pred_check
      _
    $region11: #{tpu_custom_call.1} parent=1 // pred_check_branch
      %42 = sbr.rel (0) target = $region13
    $region12: #{tpu_custom_call.1} parent=1 // pred_region
      %44 = vsyncadd [#allocation6], 0
      %s45 = sshll.u32 %s2, 4
      %s46 = int_to_ptr.hbm [resolvable:$true] %s45
      %s47 = sshll.u32 [#allocation7], 4
      %s48 = int_to_ptr.vmem [resolvable:$true] %s47
      %53 = dma.hbm_to_vmem [thread:$0]  %s46, 512, %s48, [#allocation6], 128, 128, 8
    $region13: #{tpu_custom_call.1} parent=1 // pred_fallthru
      _
    // Predicated region
    $region14: #{tpu_custom_call.1} parent=1 // pred_check
      _
    $region15: #{tpu_custom_call.1} parent=1 // pred_check_branch
      %55 = sbr.rel (0) target = $region17
    $region16: #{tpu_custom_call.1} parent=1 // pred_region
      _
    $region17: #{tpu_custom_call.1} parent=1 // pred_fallthru
      _
    // Predicated region
    $region18: #{tpu_custom_call.1} parent=1 // pred_check
      _
    $region19: #{tpu_custom_call.1} parent=1 // pred_check_branch
      %57 = sbr.rel (0) target = $region21
    $region20: #{tpu_custom_call.1} parent=1 // pred_region
      %59 = vsyncadd [#allocation9], 0
      %s60 = sshll.u32 %s4, 4
      %s61 = int_to_ptr.hbm [resolvable:$true] %s60
      %s62 = sshll.u32 [#allocation8], 4
      %s63 = int_to_ptr.vmem [resolvable:$true] %s62
      %68 = dma.hbm_to_vmem [thread:$0]  %s61, 512, %s63, [#allocation9], 128, 128, 8
    $region21: #{tpu_custom_call.1} parent=1 // pred_fallthru
      _
    // Predicated region
    $region22: #{tpu_custom_call.1} parent=1 // pred_check
      _
    $region23: #{tpu_custom_call.1} parent=1 // pred_check_branch
      %70 = sbr.rel (0) target = $region25
    $region24: #{tpu_custom_call.1} parent=1 // pred_region
      _
    $region25: #{tpu_custom_call.1} parent=1 // pred_fallthru
      _
    // Predicated region
    $region26: #{tpu_custom_call.1} parent=1 // pred_check
      _
    $region27: #{tpu_custom_call.1} parent=1 // pred_check_branch
      %72 = sbr.rel (0) target = $region29
    $region28: #{tpu_custom_call.1} parent=1 // pred_region
      %74 = dma.done [#allocation3], 256
    $region29: #{tpu_custom_call.1} parent=1 // pred_fallthru
      _
    // Predicated region
    $region30: #{tpu_custom_call.1} parent=1 // pred_check
      _
    $region31: #{tpu_custom_call.1} parent=1 // pred_check_branch
      %76 = sbr.rel (0) target = $region33
    $region32: #{tpu_custom_call.1} parent=1 // pred_region
      %78 = dma.done [#allocation6], 256
    $region33: #{tpu_custom_call.1} parent=1 // pred_fallthru
      _
    // Predicated region
    $region34: #{tpu_custom_call.1} parent=1 // pred_check
      _
    $region35: #{tpu_custom_call.1} parent=1 // pred_check_branch
      %80 = sbr.rel (0) target = $region37
    $region36: #{tpu_custom_call.1} parent=1 // pred_region
      %82 = dma.done [#allocation6], 512
    $region37: #{tpu_custom_call.1} parent=1 // pred_fallthru
      _
    // Predicated region
    $region38: #{tpu_custom_call.1} parent=1 // pred_check
      _
    $region39: #{tpu_custom_call.1} parent=1 // pred_check_branch
      %84 = sbr.rel (0) target = $region41
    $region40: #{tpu_custom_call.1} parent=1 // pred_region
      %86 = dma.done [#allocation9], 512
    $region41: #{tpu_custom_call.1} parent=1 // pred_fallthru
      _
    %v87 = vld [vmem:[#allocation2] sm:$0xff]
    %v88 = vld [vmem:[#allocation2 + $0x8] sm:$0xff]
    %v89 = vld [vmem:[#allocation7] sm:$0xff]
    %v90 = vld [vmem:[#allocation7 + $0x8] sm:$0xff]
    %v91 = vld [vmem:[#allocation7 + $0x10] sm:$0xff]
    %v92 = vld [vmem:[#allocation7 + $0x18] sm:$0xff]
    %v93 = vld [vmem:[%s3] sm:$0x1]
    %v95 = vperm.slane %v93, 0
    %vm97 = vcmask 261120
    %v99 = vsel %vm97, %v87, 0
    %v102 = vsel %vm97, %v88, 0
    %104 = vmatpush.msra.mxu0 0.0
    %105 = vmatpush.msra.mxu0 0.0
    %106 = vmatpush.msra.mxu0 0.0
    %107 = vmatpush.msra.mxu0 0.0
    %108 = vmatpush.msra.mxu0 0.0
    %109 = vmatpush.msra.mxu0 0.0
    %110 = vmatpush.msra.mxu0 0.0
    %111 = vmatpush.msra.mxu0 0.0
    %112 = vmatpush.msra.mxu0 0.0
    %113 = vmatpush.msra.mxu0 0.0
    %114 = vmatpush.msra.mxu0 0.0
    %115 = vmatpush.msra.mxu0 0.0
    %116 = vmatpush.msra.mxu0 %v92
    %117 = vmatpush.msra.mxu0 %v91
    %118 = vmatpush.msra.mxu0 %v90
    %119 = vmatpush.msra.mxu0 %v89
    %120 = vmatmul.f32.gmra.mxu0 %v99
    %v121 = vpop.f32.mrf.mxu0
    %v122 = vadd.f32 %v95, %v121
    %123 = vmatmul.f32.gmra.mxu0 %v102
    %v124 = vpop.f32.mrf.mxu0
    %v125 = vadd.f32 %v95, %v124
    %126 = vdwg.mxu0
    %v127 = vld [vmem:[#allocation5] sm:$0xff]
    %v128 = vld [vmem:[#allocation5 + $0x8] sm:$0xff]
    %vm129 = vcmp.ne.f32.partialorder %v127, 0.0
    %vm130 = vcmp.ne.f32.partialorder %v128, 0.0
    %132 = vrot.lane.b32.xlu0 %v122, 96
    %v133 = vpop.permute.xlu0 %132
    %vm134 = vcmask 64512
    %v135 = vsel %vm134, %v122, 0
    %v137 = vsel %vm134, %v133, 0
    %139 = vmatpush.xpose.msra.mxu0 0.0
    %140 = vmatpush.xpose.msra.mxu0 0.0
    %141 = vmatpush.xpose.msra.mxu0 0.0
    %142 = vmatpush.xpose.msra.mxu0 0.0
    %143 = vmatpush.xpose.msra.mxu0 0.0
    %144 = vmatpush.xpose.msra.mxu0 0.0
    %145 = vmatpush.xpose.msra.mxu0 0.0
    %146 = vmatpush.xpose.msra.mxu0 0.0
    %147 = vmatpush.xpose.msra.mxu0 0.0
    %148 = vmatpush.xpose.msra.mxu0 0.0
    %149 = vmatpush.xpose.msra.mxu0 0.0
    %150 = vmatpush.xpose.msra.mxu0 0.0
    %151 = vmatpush.xpose.msra.mxu0 0.0
    %152 = vmatpush.xpose.msra.mxu0 0.0
    %153 = vmatpush.xpose.msra.mxu0 0.0
    %154 = vmatpush.xpose.msra.mxu0 %v137
    %155 = vmatmul.f32.gmra.mxu0 %v135
    %v156 = vpop.f32.mrf.mxu0
    %v157 = vadd.f32 0.0, %v156
    %158 = vdwg.mxu0
    %160 = vrot.lane.b32.xlu0 %v125, 96
    %v161 = vpop.permute.xlu0 %160
    %v162 = vsel %vm134, %v125, 0
    %v164 = vsel %vm134, %v161, 0
    %166 = vmatpush.xpose.msra.mxu0 0.0
    %167 = vmatpush.xpose.msra.mxu0 0.0
    %168 = vmatpush.xpose.msra.mxu0 0.0
    %169 = vmatpush.xpose.msra.mxu0 0.0
    %170 = vmatpush.xpose.msra.mxu0 0.0
    %171 = vmatpush.xpose.msra.mxu0 0.0
    %172 = vmatpush.xpose.msra.mxu0 0.0
    %173 = vmatpush.xpose.msra.mxu0 0.0
    %174 = vmatpush.xpose.msra.mxu0 0.0
    %175 = vmatpush.xpose.msra.mxu0 0.0
    %176 = vmatpush.xpose.msra.mxu0 0.0
    %177 = vmatpush.xpose.msra.mxu0 0.0
    %178 = vmatpush.xpose.msra.mxu0 0.0
    %179 = vmatpush.xpose.msra.mxu0 0.0
    %180 = vmatpush.xpose.msra.mxu0 0.0
    %181 = vmatpush.xpose.msra.mxu0 %v164
    %182 = vmatmul.f32.gmra.mxu0 %v162
    %v183 = vpop.f32.mrf.mxu0
    %v184 = vadd.f32 0.0, %v183
    %185 = vdwg.mxu0
    %v186 = vsel %vm129, %v157, -65504.0
    %v187 = vsel %vm130, %v184, -65504.0
    %v188 = vsel %vm134, %v186, -inf
    %189 = vmax.xlane.f32.xlu0 %v188
    %v190 = vpop.xlane.xlu0 %189
    %v191 = vsel %vm134, %v187, -inf
    %192 = vmax.xlane.f32.xlu0 %v191
    %v193 = vpop.xlane.xlu0 %192
    %v194 = vsub.f32 %v186, %v190
    %v195 = vsub.f32 %v187, %v193
    %v196 = vmul.f32 %v194, 1.442695
    %v197 = vpow.pop %v196
    %v198 = vmul.f32 %v195, 1.442695
    %v199 = vpow.pop %v198
    %v200 = vsel %vm134, %v197, 0.0
    %201 = vadd.xlane.f32.xlu0 %v200
    %v202 = vpop.xlane.xlu0 %201
    %v203 = vsel %vm134, %v199, 0.0
    %204 = vadd.xlane.f32.xlu0 %v203
    %v205 = vpop.xlane.xlu0 %204
    %v206 = vrcp.pop %v202
    %v207 = vrcp.pop %v205
    %v208 = vmul.f32 %v197, %v206
    %v209 = vmul.f32 %v199, %v207
    %210 = vrot.lane.b32.xlu0 %v122, 64
    %v211 = vpop.permute.xlu0 %210
    %v214 = vsel %vm134, %v208, 0
    %216 = vmatpush.msra.mxu0 0.0
    %217 = vmatpush.msra.mxu0 0.0
    %218 = vmatpush.msra.mxu0 0.0
    %219 = vmatpush.msra.mxu0 0.0
    %220 = vmatpush.msra.mxu0 0.0
    %221 = vmatpush.msra.mxu0 0.0
    %222 = vmatpush.msra.mxu0 0.0
    %223 = vmatpush.msra.mxu0 0.0
    %224 = vmatpush.msra.mxu0 0.0
    %225 = vmatpush.msra.mxu0 0.0
    %226 = vmatpush.msra.mxu0 0.0
    %227 = vmatpush.msra.mxu0 0.0
    %228 = vmatpush.msra.mxu0 0.0
    %229 = vmatpush.msra.mxu0 0.0
    %230 = vmatpush.msra.mxu0 0.0
    %231 = vmatpush.msra.mxu0 %v211
    %232 = vmatmul.f32.gmra.mxu0 %v214
    %v233 = vpop.f32.mrf.mxu0
    %v234 = vadd.f32 0.0, %v233
    %235 = vdwg.mxu0
    %236 = vrot.lane.b32.xlu0 %v125, 64
    %v237 = vpop.permute.xlu0 %236
    %v240 = vsel %vm134, %v209, 0
    %242 = vmatpush.msra.mxu0 0.0
    %243 = vmatpush.msra.mxu0 0.0
    %244 = vmatpush.msra.mxu0 0.0
    %245 = vmatpush.msra.mxu0 0.0
    %246 = vmatpush.msra.mxu0 0.0
    %247 = vmatpush.msra.mxu0 0.0
    %248 = vmatpush.msra.mxu0 0.0
    %249 = vmatpush.msra.mxu0 0.0
    %250 = vmatpush.msra.mxu0 0.0
    %251 = vmatpush.msra.mxu0 0.0
    %252 = vmatpush.msra.mxu0 0.0
    %253 = vmatpush.msra.mxu0 0.0
    %254 = vmatpush.msra.mxu0 0.0
    %255 = vmatpush.msra.mxu0 0.0
    %256 = vmatpush.msra.mxu0 0.0
    %257 = vmatpush.msra.mxu0 %v237
    %258 = vmatmul.f32.gmra.mxu0 %v240
    %v259 = vpop.f32.mrf.mxu0
    %v260 = vadd.f32 0.0, %v259
    %261 = vdwg.mxu0
    %v262 = vld [vmem:[#allocation8] sm:$0xff]
    %263 = vrot.lane.b32.xlu0 %v122, 120
    %v264 = vpop.permute.xlu0 %263
    %265 = vrot.lane.b32.xlu0 %v122, 88
    %v266 = vpop.permute.xlu0 %265
    %v267 = vsel %vm134, %v264, 0
    %v269 = vsel %vm134, %v266, 0
    %271 = vmatpush.xpose.msra.mxu0 0.0
    %272 = vmatpush.xpose.msra.mxu0 0.0
    %273 = vmatpush.xpose.msra.mxu0 0.0
    %274 = vmatpush.xpose.msra.mxu0 0.0
    %275 = vmatpush.xpose.msra.mxu0 0.0
    %276 = vmatpush.xpose.msra.mxu0 0.0
    %277 = vmatpush.xpose.msra.mxu0 0.0
    %278 = vmatpush.xpose.msra.mxu0 0.0
    %279 = vmatpush.xpose.msra.mxu0 0.0
    %280 = vmatpush.xpose.msra.mxu0 0.0
    %281 = vmatpush.xpose.msra.mxu0 0.0
    %282 = vmatpush.xpose.msra.mxu0 0.0
    %283 = vmatpush.xpose.msra.mxu0 0.0
    %284 = vmatpush.xpose.msra.mxu0 0.0
    %285 = vmatpush.xpose.msra.mxu0 0.0
    %286 = vmatpush.xpose.msra.mxu0 %v269
    %287 = vmatmul.f32.gmra.mxu0 %v267
    %v288 = vpop.f32.mrf.mxu0
    %v289 = vadd.f32 0.0, %v288
    %290 = vdwg.mxu0
    %291 = vrot.lane.b32.xlu0 %v125, 120
    %v292 = vpop.permute.xlu0 %291
    %293 = vrot.lane.b32.xlu0 %v125, 88
    %v294 = vpop.permute.xlu0 %293
    %v295 = vsel %vm134, %v292, 0
    %v297 = vsel %vm134, %v294, 0
    %299 = vmatpush.xpose.msra.mxu0 0.0
    %300 = vmatpush.xpose.msra.mxu0 0.0
    %301 = vmatpush.xpose.msra.mxu0 0.0
    %302 = vmatpush.xpose.msra.mxu0 0.0
    %303 = vmatpush.xpose.msra.mxu0 0.0
    %304 = vmatpush.xpose.msra.mxu0 0.0
    %305 = vmatpush.xpose.msra.mxu0 0.0
    %306 = vmatpush.xpose.msra.mxu0 0.0
    %307 = vmatpush.xpose.msra.mxu0 0.0
    %308 = vmatpush.xpose.msra.mxu0 0.0
    %309 = vmatpush.xpose.msra.mxu0 0.0
    %310 = vmatpush.xpose.msra.mxu0 0.0
    %311 = vmatpush.xpose.msra.mxu0 0.0
    %312 = vmatpush.xpose.msra.mxu0 0.0
    %313 = vmatpush.xpose.msra.mxu0 0.0
    %314 = vmatpush.xpose.msra.mxu0 %v297
    %315 = vmatmul.f32.gmra.mxu0 %v295
    %v316 = vpop.f32.mrf.mxu0
    %v317 = vadd.f32 0.0, %v316
    %318 = vdwg.mxu0
    %v319 = vsel %vm129, %v289, -65504.0
    %v320 = vsel %vm130, %v317, -65504.0
    %v321 = vsel %vm134, %v319, -inf
    %322 = vmax.xlane.f32.xlu0 %v321
    %v323 = vpop.xlane.xlu0 %322
    %v324 = vsel %vm134, %v320, -inf
    %325 = vmax.xlane.f32.xlu0 %v324
    %v326 = vpop.xlane.xlu0 %325
    %v327 = vsub.f32 %v319, %v323
    %v328 = vsub.f32 %v320, %v326
    %v329 = vmul.f32 %v327, 1.442695
    %v330 = vpow.pop %v329
    %v331 = vmul.f32 %v328, 1.442695
    %v332 = vpow.pop %v331
    %v333 = vsel %vm134, %v330, 0.0
    %334 = vadd.xlane.f32.xlu0 %v333
    %v335 = vpop.xlane.xlu0 %334
    %v336 = vsel %vm134, %v332, 0.0
    %337 = vadd.xlane.f32.xlu0 %v336
    %v338 = vpop.xlane.xlu0 %337
    %v339 = vrcp.pop %v335
    %v340 = vrcp.pop %v338
    %v341 = vmul.f32 %v330, %v339
    %v342 = vmul.f32 %v332, %v340
    %343 = vrot.lane.b32.xlu0 %v122, 56
    %v344 = vpop.permute.xlu0 %343
    %v347 = vsel %vm134, %v341, 0
    %349 = vmatpush.msra.mxu0 0.0
    %350 = vmatpush.msra.mxu0 0.0
    %351 = vmatpush.msra.mxu0 0.0
    %352 = vmatpush.msra.mxu0 0.0
    %353 = vmatpush.msra.mxu0 0.0
    %354 = vmatpush.msra.mxu0 0.0
    %355 = vmatpush.msra.mxu0 0.0
    %356 = vmatpush.msra.mxu0 0.0
    %357 = vmatpush.msra.mxu0 0.0
    %358 = vmatpush.msra.mxu0 0.0
    %359 = vmatpush.msra.mxu0 0.0
    %360 = vmatpush.msra.mxu0 0.0
    %361 = vmatpush.msra.mxu0 0.0
    %362 = vmatpush.msra.mxu0 0.0
    %363 = vmatpush.msra.mxu0 0.0
    %364 = vmatpush.msra.mxu0 %v344
    %365 = vmatmul.f32.gmra.mxu0 %v347
    %v366 = vpop.f32.mrf.mxu0
    %v367 = vadd.f32 0.0, %v366
    %368 = vdwg.mxu0
    %369 = vrot.lane.b32.xlu0 %v125, 56
    %v370 = vpop.permute.xlu0 %369
    %v373 = vsel %vm134, %v342, 0
    %375 = vmatpush.msra.mxu0 0.0
    %376 = vmatpush.msra.mxu0 0.0
    %377 = vmatpush.msra.mxu0 0.0
    %378 = vmatpush.msra.mxu0 0.0
    %379 = vmatpush.msra.mxu0 0.0
    %380 = vmatpush.msra.mxu0 0.0
    %381 = vmatpush.msra.mxu0 0.0
    %382 = vmatpush.msra.mxu0 0.0
    %383 = vmatpush.msra.mxu0 0.0
    %384 = vmatpush.msra.mxu0 0.0
    %385 = vmatpush.msra.mxu0 0.0
    %386 = vmatpush.msra.mxu0 0.0
    %387 = vmatpush.msra.mxu0 0.0
    %388 = vmatpush.msra.mxu0 0.0
    %389 = vmatpush.msra.mxu0 0.0
    %390 = vmatpush.msra.mxu0 %v370
    %391 = vmatmul.f32.gmra.mxu0 %v373
    %v392 = vpop.f32.mrf.mxu0
    %v393 = vadd.f32 0.0, %v392
    %394 = vdwg.mxu0
    %s395 = scalar_lea.vmem [#allocation8], 8
    %v396 = vld [vmem:[%s395] sm:$0xff]
    %v398 = vsel %vm134, %v367, 0
    %v401 = vsel %vm134, %v393, 0
    %403 = vmatpush.msra.mxu0 0.0
    %404 = vmatpush.msra.mxu0 0.0
    %405 = vmatpush.msra.mxu0 0.0
    %406 = vmatpush.msra.mxu0 0.0
    %407 = vmatpush.msra.mxu0 0.0
    %408 = vmatpush.msra.mxu0 0.0
    %409 = vmatpush.msra.mxu0 0.0
    %410 = vmatpush.msra.mxu0 0.0
    %411 = vmatpush.msra.mxu0 0.0
    %412 = vmatpush.msra.mxu0 0.0
    %413 = vmatpush.msra.mxu0 0.0
    %414 = vmatpush.msra.mxu0 0.0
    %415 = vmatpush.msra.mxu0 0.0
    %416 = vmatpush.msra.mxu0 0.0
    %417 = vmatpush.msra.mxu0 0.0
    %418 = vmatpush.msra.mxu0 %v396
    %419 = vmatmul.f32.gmra.mxu0 %v398
    %v420 = vpop.f32.mrf.mxu0
    %v421 = vadd.f32 0.0, %v420
    %422 = vmatmul.f32.gmra.mxu0 %v401
    %v423 = vpop.f32.mrf.mxu0
    %v424 = vadd.f32 0.0, %v423
    %425 = vdwg.mxu0
    %v427 = vsel %vm134, %v234, 0
    %v430 = vsel %vm134, %v260, 0
    %432 = vmatpush.msra.mxu0 0.0
    %433 = vmatpush.msra.mxu0 0.0
    %434 = vmatpush.msra.mxu0 0.0
    %435 = vmatpush.msra.mxu0 0.0
    %436 = vmatpush.msra.mxu0 0.0
    %437 = vmatpush.msra.mxu0 0.0
    %438 = vmatpush.msra.mxu0 0.0
    %439 = vmatpush.msra.mxu0 0.0
    %440 = vmatpush.msra.mxu0 0.0
    %441 = vmatpush.msra.mxu0 0.0
    %442 = vmatpush.msra.mxu0 0.0
    %443 = vmatpush.msra.mxu0 0.0
    %444 = vmatpush.msra.mxu0 0.0
    %445 = vmatpush.msra.mxu0 0.0
    %446 = vmatpush.msra.mxu0 0.0
    %447 = vmatpush.msra.mxu0 %v262
    %448 = vmatmul.f32.gmra.mxu0 %v427
    %v449 = vpop.f32.mrf.mxu0
    %v450 = vadd.f32 %v421, %v449
    %451 = vmatmul.f32.gmra.mxu0 %v430
    %v452 = vpop.f32.mrf.mxu0
    %v453 = vadd.f32 %v424, %v452
    %454 = vdwg.mxu0
    %455 = vrot.lane.b32.xlu0 %v122, 112
    %v456 = vpop.permute.xlu0 %455
    %457 = vrot.lane.b32.xlu0 %v122, 80
    %v458 = vpop.permute.xlu0 %457
    %v459 = vsel %vm134, %v456, 0
    %v461 = vsel %vm134, %v458, 0
    %463 = vmatpush.xpose.msra.mxu0 0.0
    %464 = vmatpush.xpose.msra.mxu0 0.0
    %465 = vmatpush.xpose.msra.mxu0 0.0
    %466 = vmatpush.xpose.msra.mxu0 0.0
    %467 = vmatpush.xpose.msra.mxu0 0.0
    %468 = vmatpush.xpose.msra.mxu0 0.0
    %469 = vmatpush.xpose.msra.mxu0 0.0
    %470 = vmatpush.xpose.msra.mxu0 0.0
    %471 = vmatpush.xpose.msra.mxu0 0.0
    %472 = vmatpush.xpose.msra.mxu0 0.0
    %473 = vmatpush.xpose.msra.mxu0 0.0
    %474 = vmatpush.xpose.msra.mxu0 0.0
    %475 = vmatpush.xpose.msra.mxu0 0.0
    %476 = vmatpush.xpose.msra.mxu0 0.0
    %477 = vmatpush.xpose.msra.mxu0 0.0
    %478 = vmatpush.xpose.msra.mxu0 %v461
    %479 = vmatmul.f32.gmra.mxu0 %v459
    %v480 = vpop.f32.mrf.mxu0
    %v481 = vadd.f32 0.0, %v480
    %482 = vdwg.mxu0
    %483 = vrot.lane.b32.xlu0 %v125, 112
    %v484 = vpop.permute.xlu0 %483
    %485 = vrot.lane.b32.xlu0 %v125, 80
    %v486 = vpop.permute.xlu0 %485
    %v487 = vsel %vm134, %v484, 0
    %v489 = vsel %vm134, %v486, 0
    %491 = vmatpush.xpose.msra.mxu0 0.0
    %492 = vmatpush.xpose.msra.mxu0 0.0
    %493 = vmatpush.xpose.msra.mxu0 0.0
    %494 = vmatpush.xpose.msra.mxu0 0.0
    %495 = vmatpush.xpose.msra.mxu0 0.0
    %496 = vmatpush.xpose.msra.mxu0 0.0
    %497 = vmatpush.xpose.msra.mxu0 0.0
    %498 = vmatpush.xpose.msra.mxu0 0.0
    %499 = vmatpush.xpose.msra.mxu0 0.0
    %500 = vmatpush.xpose.msra.mxu0 0.0
    %501 = vmatpush.xpose.msra.mxu0 0.0
    %502 = vmatpush.xpose.msra.mxu0 0.0
    %503 = vmatpush.xpose.msra.mxu0 0.0
    %504 = vmatpush.xpose.msra.mxu0 0.0
    %505 = vmatpush.xpose.msra.mxu0 0.0
    %506 = vmatpush.xpose.msra.mxu0 %v489
    %507 = vmatmul.f32.gmra.mxu0 %v487
    %v508 = vpop.f32.mrf.mxu0
    %v509 = vadd.f32 0.0, %v508
    %510 = vdwg.mxu0
    %v511 = vsel %vm129, %v481, -65504.0
    %v512 = vsel %vm130, %v509, -65504.0
    %v513 = vsel %vm134, %v511, -inf
    %514 = vmax.xlane.f32.xlu0 %v513
    %v515 = vpop.xlane.xlu0 %514
    %v516 = vsel %vm134, %v512, -inf
    %517 = vmax.xlane.f32.xlu0 %v516
    %v518 = vpop.xlane.xlu0 %517
    %v519 = vsub.f32 %v511, %v515
    %v520 = vsub.f32 %v512, %v518
    %v521 = vmul.f32 %v519, 1.442695
    %v522 = vpow.pop %v521
    %v523 = vmul.f32 %v520, 1.442695
    %v524 = vpow.pop %v523
    %v525 = vsel %vm134, %v522, 0.0
    %526 = vadd.xlane.f32.xlu0 %v525
    %v527 = vpop.xlane.xlu0 %526
    %v528 = vsel %vm134, %v524, 0.0
    %529 = vadd.xlane.f32.xlu0 %v528
    %v530 = vpop.xlane.xlu0 %529
    %v531 = vrcp.pop %v527
    %v532 = vrcp.pop %v530
    %v533 = vmul.f32 %v522, %v531
    %v534 = vmul.f32 %v524, %v532
    %535 = vrot.lane.b32.xlu0 %v122, 48
    %v536 = vpop.permute.xlu0 %535
    %v539 = vsel %vm134, %v533, 0
    %541 = vmatpush.msra.mxu0 0.0
    %542 = vmatpush.msra.mxu0 0.0
    %543 = vmatpush.msra.mxu0 0.0
    %544 = vmatpush.msra.mxu0 0.0
    %545 = vmatpush.msra.mxu0 0.0
    %546 = vmatpush.msra.mxu0 0.0
    %547 = vmatpush.msra.mxu0 0.0
    %548 = vmatpush.msra.mxu0 0.0
    %549 = vmatpush.msra.mxu0 0.0
    %550 = vmatpush.msra.mxu0 0.0
    %551 = vmatpush.msra.mxu0 0.0
    %552 = vmatpush.msra.mxu0 0.0
    %553 = vmatpush.msra.mxu0 0.0
    %554 = vmatpush.msra.mxu0 0.0
    %555 = vmatpush.msra.mxu0 0.0
    %556 = vmatpush.msra.mxu0 %v536
    %557 = vmatmul.f32.gmra.mxu0 %v539
    %v558 = vpop.f32.mrf.mxu0
    %v559 = vadd.f32 0.0, %v558
    %560 = vdwg.mxu0
    %561 = vrot.lane.b32.xlu0 %v125, 48
    %v562 = vpop.permute.xlu0 %561
    %v565 = vsel %vm134, %v534, 0
    %567 = vmatpush.msra.mxu0 0.0
    %568 = vmatpush.msra.mxu0 0.0
    %569 = vmatpush.msra.mxu0 0.0
    %570 = vmatpush.msra.mxu0 0.0
    %571 = vmatpush.msra.mxu0 0.0
    %572 = vmatpush.msra.mxu0 0.0
    %573 = vmatpush.msra.mxu0 0.0
    %574 = vmatpush.msra.mxu0 0.0
    %575 = vmatpush.msra.mxu0 0.0
    %576 = vmatpush.msra.mxu0 0.0
    %577 = vmatpush.msra.mxu0 0.0
    %578 = vmatpush.msra.mxu0 0.0
    %579 = vmatpush.msra.mxu0 0.0
    %580 = vmatpush.msra.mxu0 0.0
    %581 = vmatpush.msra.mxu0 0.0
    %582 = vmatpush.msra.mxu0 %v562
    %583 = vmatmul.f32.gmra.mxu0 %v565
    %v584 = vpop.f32.mrf.mxu0
    %v585 = vadd.f32 0.0, %v584
    %586 = vdwg.mxu0
    %s587 = scalar_lea.vmem [#allocation8], 16
    %v588 = vld [vmem:[%s587] sm:$0xff]
    %v590 = vsel %vm134, %v559, 0
    %v593 = vsel %vm134, %v585, 0
    %595 = vmatpush.msra.mxu0 0.0
    %596 = vmatpush.msra.mxu0 0.0
    %597 = vmatpush.msra.mxu0 0.0
    %598 = vmatpush.msra.mxu0 0.0
    %599 = vmatpush.msra.mxu0 0.0
    %600 = vmatpush.msra.mxu0 0.0
    %601 = vmatpush.msra.mxu0 0.0
    %602 = vmatpush.msra.mxu0 0.0
    %603 = vmatpush.msra.mxu0 0.0
    %604 = vmatpush.msra.mxu0 0.0
    %605 = vmatpush.msra.mxu0 0.0
    %606 = vmatpush.msra.mxu0 0.0
    %607 = vmatpush.msra.mxu0 0.0
    %608 = vmatpush.msra.mxu0 0.0
    %609 = vmatpush.msra.mxu0 0.0
    %610 = vmatpush.msra.mxu0 %v588
    %611 = vmatmul.f32.gmra.mxu0 %v590
    %v612 = vpop.f32.mrf.mxu0
    %v613 = vadd.f32 0.0, %v612
    %614 = vmatmul.f32.gmra.mxu0 %v593
    %v615 = vpop.f32.mrf.mxu0
    %v616 = vadd.f32 0.0, %v615
    %617 = vdwg.mxu0
    %v618 = vadd.f32 %v450, %v613
    %v619 = vadd.f32 %v453, %v616
    %620 = vrot.lane.b32.xlu0 %v122, 104
    %v621 = vpop.permute.xlu0 %620
    %622 = vrot.lane.b32.xlu0 %v122, 72
    %v623 = vpop.permute.xlu0 %622
    %v624 = vsel %vm134, %v621, 0
    %v626 = vsel %vm134, %v623, 0
    %628 = vmatpush.xpose.msra.mxu0 0.0
    %629 = vmatpush.xpose.msra.mxu0 0.0
    %630 = vmatpush.xpose.msra.mxu0 0.0
    %631 = vmatpush.xpose.msra.mxu0 0.0
    %632 = vmatpush.xpose.msra.mxu0 0.0
    %633 = vmatpush.xpose.msra.mxu0 0.0
    %634 = vmatpush.xpose.msra.mxu0 0.0
    %635 = vmatpush.xpose.msra.mxu0 0.0
    %636 = vmatpush.xpose.msra.mxu0 0.0
    %637 = vmatpush.xpose.msra.mxu0 0.0
    %638 = vmatpush.xpose.msra.mxu0 0.0
    %639 = vmatpush.xpose.msra.mxu0 0.0
    %640 = vmatpush.xpose.msra.mxu0 0.0
    %641 = vmatpush.xpose.msra.mxu0 0.0
    %642 = vmatpush.xpose.msra.mxu0 0.0
    %643 = vmatpush.xpose.msra.mxu0 %v626
    %644 = vmatmul.f32.gmra.mxu0 %v624
    %v645 = vpop.f32.mrf.mxu0
    %v646 = vadd.f32 0.0, %v645
    %647 = vdwg.mxu0
    %648 = vrot.lane.b32.xlu0 %v125, 104
    %v649 = vpop.permute.xlu0 %648
    %650 = vrot.lane.b32.xlu0 %v125, 72
    %v651 = vpop.permute.xlu0 %650
    %v652 = vsel %vm134, %v649, 0
    %v654 = vsel %vm134, %v651, 0
    %656 = vmatpush.xpose.msra.mxu0 0.0
    %657 = vmatpush.xpose.msra.mxu0 0.0
    %658 = vmatpush.xpose.msra.mxu0 0.0
    %659 = vmatpush.xpose.msra.mxu0 0.0
    %660 = vmatpush.xpose.msra.mxu0 0.0
    %661 = vmatpush.xpose.msra.mxu0 0.0
    %662 = vmatpush.xpose.msra.mxu0 0.0
    %663 = vmatpush.xpose.msra.mxu0 0.0
    %664 = vmatpush.xpose.msra.mxu0 0.0
    %665 = vmatpush.xpose.msra.mxu0 0.0
    %666 = vmatpush.xpose.msra.mxu0 0.0
    %667 = vmatpush.xpose.msra.mxu0 0.0
    %668 = vmatpush.xpose.msra.mxu0 0.0
    %669 = vmatpush.xpose.msra.mxu0 0.0
    %670 = vmatpush.xpose.msra.mxu0 0.0
    %671 = vmatpush.xpose.msra.mxu0 %v654
    %672 = vmatmul.f32.gmra.mxu0 %v652
    %v673 = vpop.f32.mrf.mxu0
    %v674 = vadd.f32 0.0, %v673
    %675 = vdwg.mxu0
    %v676 = vsel %vm129, %v646, -65504.0
    %v677 = vsel %vm130, %v674, -65504.0
    %v678 = vsel %vm134, %v676, -inf
    %679 = vmax.xlane.f32.xlu0 %v678
    %v680 = vpop.xlane.xlu0 %679
    %v681 = vsel %vm134, %v677, -inf
    %682 = vmax.xlane.f32.xlu0 %v681
    %v683 = vpop.xlane.xlu0 %682
    %v684 = vsub.f32 %v676, %v680
    %v685 = vsub.f32 %v677, %v683
    %v686 = vmul.f32 %v684, 1.442695
    %v687 = vpow.pop %v686
    %v688 = vmul.f32 %v685, 1.442695
    %v689 = vpow.pop %v688
    %v690 = vsel %vm134, %v687, 0.0
    %691 = vadd.xlane.f32.xlu0 %v690
    %v692 = vpop.xlane.xlu0 %691
    %v693 = vsel %vm134, %v689, 0.0
    %694 = vadd.xlane.f32.xlu0 %v693
    %v695 = vpop.xlane.xlu0 %694
    %v696 = vrcp.pop %v692
    %v697 = vrcp.pop %v695
    %v698 = vmul.f32 %v687, %v696
    %v699 = vmul.f32 %v689, %v697
    %700 = vrot.lane.b32.xlu0 %v122, 40
    %v701 = vpop.permute.xlu0 %700
    %v704 = vsel %vm134, %v698, 0
    %706 = vmatpush.msra.mxu0 0.0
    %707 = vmatpush.msra.mxu0 0.0
    %708 = vmatpush.msra.mxu0 0.0
    %709 = vmatpush.msra.mxu0 0.0
    %710 = vmatpush.msra.mxu0 0.0
    %711 = vmatpush.msra.mxu0 0.0
    %712 = vmatpush.msra.mxu0 0.0
    %713 = vmatpush.msra.mxu0 0.0
    %714 = vmatpush.msra.mxu0 0.0
    %715 = vmatpush.msra.mxu0 0.0
    %716 = vmatpush.msra.mxu0 0.0
    %717 = vmatpush.msra.mxu0 0.0
    %718 = vmatpush.msra.mxu0 0.0
    %719 = vmatpush.msra.mxu0 0.0
    %720 = vmatpush.msra.mxu0 0.0
    %721 = vmatpush.msra.mxu0 %v701
    %722 = vmatmul.f32.gmra.mxu0 %v704
    %v723 = vpop.f32.mrf.mxu0
    %v724 = vadd.f32 0.0, %v723
    %725 = vdwg.mxu0
    %726 = vrot.lane.b32.xlu0 %v125, 40
    %v727 = vpop.permute.xlu0 %726
    %v730 = vsel %vm134, %v699, 0
    %732 = vmatpush.msra.mxu0 0.0
    %733 = vmatpush.msra.mxu0 0.0
    %734 = vmatpush.msra.mxu0 0.0
    %735 = vmatpush.msra.mxu0 0.0
    %736 = vmatpush.msra.mxu0 0.0
    %737 = vmatpush.msra.mxu0 0.0
    %738 = vmatpush.msra.mxu0 0.0
    %739 = vmatpush.msra.mxu0 0.0
    %740 = vmatpush.msra.mxu0 0.0
    %741 = vmatpush.msra.mxu0 0.0
    %742 = vmatpush.msra.mxu0 0.0
    %743 = vmatpush.msra.mxu0 0.0
    %744 = vmatpush.msra.mxu0 0.0
    %745 = vmatpush.msra.mxu0 0.0
    %746 = vmatpush.msra.mxu0 0.0
    %747 = vmatpush.msra.mxu0 %v727
    %748 = vmatmul.f32.gmra.mxu0 %v730
    %v749 = vpop.f32.mrf.mxu0
    %v750 = vadd.f32 0.0, %v749
    %751 = vdwg.mxu0
    %s752 = scalar_lea.vmem [#allocation8], 24
    %v753 = vld [vmem:[%s752] sm:$0xff]
    %v755 = vsel %vm134, %v724, 0
    %v758 = vsel %vm134, %v750, 0
    %760 = vmatpush.msra.mxu0 0.0
    %761 = vmatpush.msra.mxu0 0.0
    %762 = vmatpush.msra.mxu0 0.0
    %763 = vmatpush.msra.mxu0 0.0
    %764 = vmatpush.msra.mxu0 0.0
    %765 = vmatpush.msra.mxu0 0.0
    %766 = vmatpush.msra.mxu0 0.0
    %767 = vmatpush.msra.mxu0 0.0
    %768 = vmatpush.msra.mxu0 0.0
    %769 = vmatpush.msra.mxu0 0.0
    %770 = vmatpush.msra.mxu0 0.0
    %771 = vmatpush.msra.mxu0 0.0
    %772 = vmatpush.msra.mxu0 0.0
    %773 = vmatpush.msra.mxu0 0.0
    %774 = vmatpush.msra.mxu0 0.0
    %775 = vmatpush.msra.mxu0 %v753
    %776 = vmatmul.f32.gmra.mxu0 %v755
    %v777 = vpop.f32.mrf.mxu0
    %v778 = vadd.f32 0.0, %v777
    %779 = vmatmul.f32.gmra.mxu0 %v758
    %v780 = vpop.f32.mrf.mxu0
    %v781 = vadd.f32 0.0, %v780
    %782 = vdwg.mxu0
    %v783 = vadd.f32 %v618, %v778
    %v784 = vadd.f32 %v619, %v781
    %v785 = vld [vmem:[%s5] sm:$0x1]
    %v787 = vperm.slane %v785, 0
    %v789 = vadd.f32 %v783, %v787
    %v790 = vadd.f32 %v784, %v787
    %791 = vst.msk [vmem:[#allocation10] sm:$0xff] %vm97, %v789
    %792 = vst.msk [vmem:[#allocation10 + $0x8] sm:$0xff] %vm97, %v790
    // Predicated region
    $region42: #{tpu_custom_call.1} parent=1 // pred_check
      _
    $region43: #{tpu_custom_call.1} parent=1 // pred_check_branch
      %794 = sbr.rel (0) target = $region45
    $region44: #{tpu_custom_call.1} parent=1 // pred_region
      %796 = vsyncadd [#allocation4], 0
      %s797 = sshll.u32 [#allocation10], 4
      %s798 = int_to_ptr.vmem [resolvable:$true] %s797
      %s799 = sshll.u32 %s6, 4
      %s800 = int_to_ptr.hbm [resolvable:$true] %s799
      %805 = dma.vmem_to_hbm [thread:$0]  %s798, 256, %s800, [#allocation4], 128, 128, 8
    $region45: #{tpu_custom_call.1} parent=1 // pred_fallthru
      _
    // Predicated region
    $region46: #{tpu_custom_call.1} parent=1 // pred_check
      _
    $region47: #{tpu_custom_call.1} parent=1 // pred_check_branch
      %807 = sbr.rel (0) target = $region49
    $region48: #{tpu_custom_call.1} parent=1 // pred_region
      %809 = dma.done [#allocation4], 256
    $region49: #{tpu_custom_call.1} parent=1 // pred_fallthru
      _
    %810 = vsyncpa [#allocation3], 1
    %811 = vsyncpa [#allocation6], 1
    %812 = vsyncpa [#allocation9], 1
    %813 = vsyncpa [#allocation4], 1

</llo_original>
